<compile_context>
chip_gen: v6e
topology: v6e:2x2x1
jax: 0.10.0
libtpu: 0.0.40
codegen_flags: <defaults>
</compile_context>

<pallas_src>
import jax
import jax.numpy as jnp
from jax.experimental import pallas as pl
from jax.experimental.pallas import tpu as pltpu

LOG_SIG_MAX = 2.0
LOG_SIG_MIN = -2.0


def make_policy_kernel(dimA):
    """Build the kernel with dimA baked in (needed to split the packed heads)."""

    def policy_kernel(x_ref, w1_ref, b1_ref, wh_ref, bh_ref, out_ref):
        # Hidden layer + ReLU (MXU matmul, f32 accumulation; bias add hoisted once per tile)
        x = x_ref[...]
        h = jnp.dot(x, w1_ref[...], preferred_element_type=jnp.float32) + b1_ref[...]
        h = jnp.maximum(h, 0.0)

        # Fused heads: one matmul produces [tb, 2*dimA] = (mean ‖ log_std)
        heads = jnp.dot(h, wh_ref[...], preferred_element_type=jnp.float32) + bh_ref[...]

        # std = exp(clip(log_std)) computed lane-wise on all columns (EUP/VPU),
        # then selected only for the log_std half — stays lane-dense, no
        # slice/concat relayouts inside the kernel.
        std_all = jnp.exp(jnp.clip(heads, LOG_SIG_MIN, LOG_SIG_MAX))
        col = jax.lax.broadcasted_iota(jnp.int32, heads.shape, dimension=1)
        out_ref[...] = jnp.where(col < dimA, heads, std_all).astype(out_ref.dtype)

    return policy_kernel


def policy_forward(x, params, *, block_b=512):
    """x: [B, dimS] f32.  Returns (mean, std), each [B, dimA] f32."""
    w1, b1, wm, bm, ws, bs = params
    B, dimS = x.shape
    H = w1.shape[1]
    dimA = wm.shape[1]

    # Fuse the two heads (done once in the XLA wrapper; trivially cheap).
    w_heads = jnp.concatenate([wm, ws], axis=1)   # [H, 2*dimA]
    b_heads = jnp.concatenate([bm, bs], axis=1)   # [1, 2*dimA]

    # Batch tile: largest tile up to block_b (multiple of 8 for sublane alignment),
    # or the whole batch if it is small.
    tb = B if B <= block_b else block_b
    grid = (pl.cdiv(B, tb),)

    packed = pl.pallas_call(
        make_policy_kernel(dimA),
        out_shape=jax.ShapeDtypeStruct((B, 2 * dimA), jnp.float32),
        grid=grid,
        in_specs=[
            pl.BlockSpec((tb, dimS), lambda i: (i, 0)),       # x: batch-tiled
            pl.BlockSpec((dimS, H), lambda i: (0, 0)),        # W1: resident
            pl.BlockSpec((1, H), lambda i: (0, 0)),           # b1: resident
            pl.BlockSpec((H, 2 * dimA), lambda i: (0, 0)),    # fused head W: resident
            pl.BlockSpec((1, 2 * dimA), lambda i: (0, 0)),    # fused head b: resident
        ],
        out_specs=pl.BlockSpec((tb, 2 * dimA), lambda i: (i, 0)),
        compiler_params=pltpu.CompilerParams(
            dimension_semantics=("parallel",),                # v7x: shard batch tiles across TCs
            vmem_limit_bytes=64 * 1024 * 1024,                # explicit cap (safe on v7x's 64 MiB)
        ),
    )(x, w1, b1, w_heads, b_heads)

    mean = packed[:, :dimA]
    std = packed[:, dimA:]
    return mean, std


def init_policy_params(key, dimS, dimA, hidden_size):
    """Deterministic init mirroring nn.Linear's U(-1/sqrt(fan_in), 1/sqrt(fan_in)).
    Weights are stored as [in, out] (transposed relative to PyTorch)."""
    k = jax.random.split(key, 6)

    def linear(kw, kb, fan_in, fan_out):
        bound = 1.0 / jnp.sqrt(fan_in)
        w = jax.random.uniform(kw, (fan_in, fan_out), jnp.float32, -bound, bound)
        b = jax.random.uniform(kb, (1, fan_out), jnp.float32, -bound, bound)
        return w, b

    w1, b1 = linear(k[0], k[1], dimS, hidden_size)
    wm, bm = linear(k[2], k[3], hidden_size, dimA)
    ws, bs = linear(k[4], k[5], hidden_size, dimA)
    return (w1, b1, wm, bm, ws, bs)


def policy_forward_ref(x, params):
    """Pure-JAX reference for correctness checking."""
    w1, b1, wm, bm, ws, bs = params
    h = jnp.maximum(x @ w1 + b1, 0.0)
    mean = h @ wm + bm
    log_std = jnp.clip(h @ ws + bs, LOG_SIG_MIN, LOG_SIG_MAX)
    return mean, jnp.exp(log_std)


# TODO(synk): for RL rollout loops, fuse reparameterized sampling (prng_random_bits),
# tanh squash and log-prob into this kernel to amortize the pallas_call launch cost.


if __name__ == "__main__":
    dimS, dimA, hidden_size = 16, 4, 32

    key = jax.random.PRNGKey(0)
    kx, kp, kx2 = jax.random.split(key, 3)
    params = init_policy_params(kp, dimS, dimA, hidden_size)

    # Small batch: single grid step.
    batch = 8
    x = jax.random.normal(kx, (batch, dimS), dtype=jnp.float32)
    mean, std = jax.block_until_ready(policy_forward(x, params))
    mean_ref, std_ref = policy_forward_ref(x, params)
    assert mean.shape == (batch, dimA) and std.shape == (batch, dimA)
    assert jnp.allclose(mean, mean_ref, atol=1e-5, rtol=1e-5)
    assert jnp.allclose(std, std_ref, atol=1e-5, rtol=1e-5)
    assert bool(jnp.all(std > 0.0))

    # Slightly larger batch: exercises the batch grid / pipelined path.
    batch2 = 128
    x2 = jax.random.normal(kx2, (batch2, dimS), dtype=jnp.float32)
    mean2, std2 = jax.block_until_ready(policy_forward(x2, params, block_b=32))
    mean2_ref, std2_ref = policy_forward_ref(x2, params)
    assert mean2.shape == (batch2, dimA) and std2.shape == (batch2, dimA)
    assert jnp.allclose(mean2, mean2_ref, atol=1e-5, rtol=1e-5)
    assert jnp.allclose(std2, std2_ref, atol=1e-5, rtol=1e-5)
    assert bool(jnp.all(std2 > 0.0))

    print("KERNEL_OK")
</pallas_src>

<mosaic_0001>
module attributes {stable_mosaic.version = 11 : i64} {
  func.func @policy_kernel(%arg0: i32, %arg1: memref<8x16xf32, #tpu.memory_space<vmem>>, %arg2: memref<16x32xf32, #tpu.memory_space<vmem>>, %arg3: memref<1x32xf32, #tpu.memory_space<vmem>>, %arg4: memref<32x8xf32, #tpu.memory_space<vmem>>, %arg5: memref<1x8xf32, #tpu.memory_space<vmem>>, %arg6: memref<8x8xf32, #tpu.memory_space<vmem>>) attributes {dimension_semantics = [#tpu.dimension_semantics<parallel>], iteration_bounds = array<i64: 1>, scalar_prefetch = 0 : i64, scratch_operands = 0 : i64, tpu.core_type = #tpu.core_type<tc>, window_params = [{transform_indices = @transform_0, window_bounds = array<i64: 8, 16>}, {pipeline_mode = #tpu.pipeline_mode<synchronous>, transform_indices = @transform_1, window_bounds = array<i64: 16, 32>}, {pipeline_mode = #tpu.pipeline_mode<synchronous>, transform_indices = @transform_2, window_bounds = array<i64: 1, 32>}, {pipeline_mode = #tpu.pipeline_mode<synchronous>, transform_indices = @transform_3, window_bounds = array<i64: 32, 8>}, {pipeline_mode = #tpu.pipeline_mode<synchronous>, transform_indices = @transform_4, window_bounds = array<i64: 1, 8>}, {transform_indices = @transform_5, window_bounds = array<i64: 8, 8>}]} {
    %c0 = arith.constant 0 : index
    %c0_0 = arith.constant 0 : index
    %0 = vector.load %arg1[%c0, %c0_0] : memref<8x16xf32, #tpu.memory_space<vmem>>, vector<8x16xf32>
    %c0_1 = arith.constant 0 : index
    %c0_2 = arith.constant 0 : index
    %1 = vector.load %arg2[%c0_1, %c0_2] : memref<16x32xf32, #tpu.memory_space<vmem>>, vector<16x32xf32>
    %cst = arith.constant dense<0.000000e+00> : vector<8x32xf32>
    %2 = tpu.matmul %0, %1, %cst {dimension_numbers = #tpu.dot_dimension_numbers<[1], [0], [0], [1], [0, 0, 1, 1], [], []>} : vector<8x16xf32>, vector<16x32xf32>, vector<8x32xf32> -> vector<8x32xf32>
    %c0_3 = arith.constant 0 : index
    %c0_4 = arith.constant 0 : index
    %3 = vector.load %arg3[%c0_3, %c0_4] : memref<1x32xf32, #tpu.memory_space<vmem>>, vector<1x32xf32>
    %4 = vector.broadcast %3 : vector<1x32xf32> to vector<8x32xf32>
    %5 = arith.addf %2, %4 : vector<8x32xf32>
    %cst_5 = arith.constant 0.000000e+00 : f32
    %6 = vector.broadcast %cst_5 : f32 to vector<8x32xf32>
    %7 = arith.maximumf %5, %6 : vector<8x32xf32>
    %c0_6 = arith.constant 0 : index
    %c0_7 = arith.constant 0 : index
    %8 = vector.load %arg4[%c0_6, %c0_7] : memref<32x8xf32, #tpu.memory_space<vmem>>, vector<32x8xf32>
    %cst_8 = arith.constant dense<0.000000e+00> : vector<8x8xf32>
    %9 = tpu.matmul %7, %8, %cst_8 {dimension_numbers = #tpu.dot_dimension_numbers<[1], [0], [0], [1], [0, 0, 1, 1], [], []>} : vector<8x32xf32>, vector<32x8xf32>, vector<8x8xf32> -> vector<8x8xf32>
    %c0_9 = arith.constant 0 : index
    %c0_10 = arith.constant 0 : index
    %10 = vector.load %arg5[%c0_9, %c0_10] : memref<1x8xf32, #tpu.memory_space<vmem>>, vector<1x8xf32>
    %11 = vector.broadcast %10 : vector<1x8xf32> to vector<8x8xf32>
    %12 = arith.addf %9, %11 : vector<8x8xf32>
    %cst_11 = arith.constant -2.000000e+00 : f32
    %cst_12 = arith.constant 2.000000e+00 : f32
    %13 = vector.broadcast %cst_11 : f32 to vector<8x8xf32>
    %14 = arith.maximumf %13, %12 : vector<8x8xf32>
    %15 = vector.broadcast %cst_12 : f32 to vector<8x8xf32>
    %16 = arith.minimumf %15, %14 : vector<8x8xf32>
    %17 = math.exp %16 : vector<8x8xf32>
    %18 = tpu.iota {dimensions = array<i32: 1>} : vector<8x8xi32>
    %c4_i32 = arith.constant 4 : i32
    %19 = vector.broadcast %c4_i32 : i32 to vector<8x8xi32>
    %20 = arith.cmpi slt, %18, %19 : vector<8x8xi32>
    %21 = arith.select %20, %12, %17 : vector<8x8xi1>, vector<8x8xf32>
    %c0_13 = arith.constant 0 : index
    %c0_14 = arith.constant 0 : index
    %22 = vector.load %arg6[%c0_13, %c0_14] : memref<8x8xf32, #tpu.memory_space<vmem>>, vector<8x8xf32>
    tpu.vector_store %arg6[%c0_13, %c0_14], %21 {strides = array<i32>} : memref<8x8xf32, #tpu.memory_space<vmem>>, vector<8x8xf32>,
    return
  }
  func.func @transform_0(%arg0: i32) -> (i32, i32) {
    %c0_i32 = arith.constant 0 : i32
    %c0_i32_0 = arith.constant 0 : i32
    return %arg0, %c0_i32 : i32, i32
  }
  func.func @transform_1(%arg0: i32) -> (i32, i32) {
    %c0_i32 = arith.constant 0 : i32
    %c0_i32_0 = arith.constant 0 : i32
    %c0_i32_1 = arith.constant 0 : i32
    return %c0_i32, %c0_i32_0 : i32, i32
  }
  func.func @transform_2(%arg0: i32) -> (i32, i32) {
    %c0_i32 = arith.constant 0 : i32
    %c0_i32_0 = arith.constant 0 : i32
    %c0_i32_1 = arith.constant 0 : i32
    return %c0_i32, %c0_i32_0 : i32, i32
  }
  func.func @transform_3(%arg0: i32) -> (i32, i32) {
    %c0_i32 = arith.constant 0 : i32
    %c0_i32_0 = arith.constant 0 : i32
    %c0_i32_1 = arith.constant 0 : i32
    return %c0_i32, %c0_i32_0 : i32, i32
  }
  func.func @transform_4(%arg0: i32) -> (i32, i32) {
    %c0_i32 = arith.constant 0 : i32
    %c0_i32_0 = arith.constant 0 : i32
    %c0_i32_1 = arith.constant 0 : i32
    return %c0_i32, %c0_i32_0 : i32, i32
  }
  func.func @transform_5(%arg0: i32) -> (i32, i32) {
    %c0_i32 = arith.constant 0 : i32
    %c0_i32_0 = arith.constant 0 : i32
    return %arg0, %c0_i32 : i32, i32
  }
}

</mosaic_0001>

<llo_original>
// kernel: tpu_custom_call.1
$region0: #{tpu_custom_call.1}
  #allocation0 [shape = 'u32[]', space=smem, size = 0x4, offset = 0x4, fixed_abs, tag = 'smem constant byte address 0x4 - core index']
  #allocation1 [shape = 'u32[144,128]{1,0:T(1,128)}', space=vmem, size = 0x12000, scoped, tag = 'internal scratch']
  %s0 = inlined_call_operand.vmem [shape: f32[8,16], index: 0, kind: input, shape index: {}]
  %s1 = inlined_call_operand.vmem [shape: f32[16,32], index: 1, kind: input, shape index: {}]
  %s2 = inlined_call_operand.vmem [shape: f32[1,32], index: 2, kind: input, shape index: {}]
  %s3 = inlined_call_operand.vmem [shape: f32[32,8], index: 3, kind: input, shape index: {}]
  %s4 = inlined_call_operand.vmem [shape: f32[1,8], index: 4, kind: input, shape index: {}]
  %s5 = inlined_call_operand.hbm [shape: f32[8,8], index: 5, kind: output, shape index: {}]
  %s6 = sld [smem:[#allocation0]]
  $region30: #{tpu_custom_call.1} parent=0
    _
  %s8 = ssub.s32 1, %s6
  %s9 = scalar_select 0, %s8, %s6
  $region1: #{tpu_custom_call.1} parent=0
    #allocation2 [shape = 'u8[4096]{0}', space=vmem, size = 0x1000, scoped, tag = 'output window, operand 0, single buffered']
    #allocation3 [shape = 's32[1]{0}', space=sflag, size = 0x4, scoped, tag = 'scoped memory for tpu_custom_call.1']
    %10 = vsyncpa [#allocation3], 0
    // Predicated region
    $region2: #{tpu_custom_call.1} parent=1 // pred_check
      _
    $region3: #{tpu_custom_call.1} parent=1 // pred_check_branch
      %12 = sbr.rel (0) target = $region5
    $region4: #{tpu_custom_call.1} parent=1 // pred_region
      _
    $region5: #{tpu_custom_call.1} parent=1 // pred_fallthru
      _
    // Predicated region
    $region6: #{tpu_custom_call.1} parent=1 // pred_check
      _
    $region7: #{tpu_custom_call.1} parent=1 // pred_check_branch
      %14 = sbr.rel (0) target = $region9
    $region8: #{tpu_custom_call.1} parent=1 // pred_region
      _
    $region9: #{tpu_custom_call.1} parent=1 // pred_fallthru
      _
    // Predicated region
    $region10: #{tpu_custom_call.1} parent=1 // pred_check
      _
    $region11: #{tpu_custom_call.1} parent=1 // pred_check_branch
      %16 = sbr.rel (0) target = $region13
    $region12: #{tpu_custom_call.1} parent=1 // pred_region
      _
    $region13: #{tpu_custom_call.1} parent=1 // pred_fallthru
      _
    // Predicated region
    $region14: #{tpu_custom_call.1} parent=1 // pred_check
      _
    $region15: #{tpu_custom_call.1} parent=1 // pred_check_branch
      %18 = sbr.rel (0) target = $region17
    $region16: #{tpu_custom_call.1} parent=1 // pred_region
      _
    $region17: #{tpu_custom_call.1} parent=1 // pred_fallthru
      _
    // Predicated region
    $region18: #{tpu_custom_call.1} parent=1 // pred_check
      _
    $region19: #{tpu_custom_call.1} parent=1 // pred_check_branch
      %20 = sbr.rel (0) target = $region21
    $region20: #{tpu_custom_call.1} parent=1 // pred_region
      _
    $region21: #{tpu_custom_call.1} parent=1 // pred_fallthru
      _
    %v21 = vld [vmem:[%s0] sm:$0xff]
    %v22 = vld [vmem:[%s1] sm:$0xff]
    %v23 = vld [vmem:[%s1 + $0x8] sm:$0xff]
    %v24 = vld [vmem:[%s2] sm:$0x1]
    %v26 = vlaneseq
    %v27 = vshrl.u32 %v26, 7
    %v28 = vsub.s32 0, %v27
    %v29 = vrot.slane %v24, %v28
    %vm31 = vcmask 130048
    %v33 = vsel %vm31, %v21, 0
    %35 = vmatprep.subr.mxu0 0.0
    %36 = vmatpush1.msra.mxu0 0.0
    %37 = vmatprep.subr.mxu0 0.0
    %38 = vmatpush1.msra.mxu0 0.0
    %39 = vmatprep.subr.mxu0 0.0
    %40 = vmatpush1.msra.mxu0 0.0
    %41 = vmatprep.subr.mxu0 0.0
    %42 = vmatpush1.msra.mxu0 0.0
    %43 = vmatprep.subr.mxu0 0.0
    %44 = vmatpush1.msra.mxu0 0.0
    %45 = vmatprep.subr.mxu0 0.0
    %46 = vmatpush1.msra.mxu0 0.0
    %47 = vmatprep.subr.mxu0 0.0
    %48 = vmatpush1.msra.mxu0 0.0
    %49 = vmatprep.subr.mxu0 0.0
    %50 = vmatpush1.msra.mxu0 0.0
    %51 = vmatprep.subr.mxu0 0.0
    %52 = vmatpush1.msra.mxu0 0.0
    %53 = vmatprep.subr.mxu0 0.0
    %54 = vmatpush1.msra.mxu0 0.0
    %55 = vmatprep.subr.mxu0 0.0
    %56 = vmatpush1.msra.mxu0 0.0
    %57 = vmatprep.subr.mxu0 0.0
    %58 = vmatpush1.msra.mxu0 0.0
    %59 = vmatprep.subr.mxu0 0.0
    %60 = vmatpush1.msra.mxu0 0.0
    %61 = vmatprep.subr.mxu0 0.0
    %62 = vmatpush1.msra.mxu0 0.0
    %63 = vmatprep.subr.mxu0 0.0
    %64 = vmatpush1.msra.mxu0 %v23
    %65 = vmatprep.subr.mxu0 0.0
    %66 = vmatpush1.msra.mxu0 %v22
    %67 = vmatprep.subr.mxu0 0.0
    %68 = vmatpush2.msra.mxu0 0.0
    %69 = vmatprep.subr.mxu0 0.0
    %70 = vmatpush2.msra.mxu0 0.0
    %71 = vmatprep.subr.mxu0 0.0
    %72 = vmatpush2.msra.mxu0 0.0
    %73 = vmatprep.subr.mxu0 0.0
    %74 = vmatpush2.msra.mxu0 0.0
    %75 = vmatprep.subr.mxu0 0.0
    %76 = vmatpush2.msra.mxu0 0.0
    %77 = vmatprep.subr.mxu0 0.0
    %78 = vmatpush2.msra.mxu0 0.0
    %79 = vmatprep.subr.mxu0 0.0
    %80 = vmatpush2.msra.mxu0 0.0
    %81 = vmatprep.subr.mxu0 0.0
    %82 = vmatpush2.msra.mxu0 0.0
    %83 = vmatprep.subr.mxu0 0.0
    %84 = vmatpush2.msra.mxu0 0.0
    %85 = vmatprep.subr.mxu0 0.0
    %86 = vmatpush2.msra.mxu0 0.0
    %87 = vmatprep.subr.mxu0 0.0
    %88 = vmatpush2.msra.mxu0 0.0
    %89 = vmatprep.subr.mxu0 0.0
    %90 = vmatpush2.msra.mxu0 0.0
    %91 = vmatprep.subr.mxu0 0.0
    %92 = vmatpush2.msra.mxu0 0.0
    %93 = vmatprep.subr.mxu0 0.0
    %94 = vmatpush2.msra.mxu0 0.0
    %95 = vmatprep.subr.mxu0 0.0
    %96 = vmatpush2.msra.mxu0 0.0
    %97 = vmatprep.subr.mxu0 0.0
    %98 = vmatpush2.msra.mxu0 0.0
    %99 = vmatprep.mubr.f32.mxu0 0.0
    %100 = vmatmul.mubr.f32.gmra.mxu0 %v33
    %v101 = vpop.f32.mrf.mxu0
    %v102 = vadd.f32 %v29, %v101
    %v103 = vpop.f32.mrf.mxu0
    %104 = vdwg.mxu0
    %v105 = vmax.f32 %v102, 0.0
    %v106 = vld [vmem:[%s3] sm:$0xff]
    %v107 = vld [vmem:[%s3 + $0x8] sm:$0xff]
    %v108 = vld [vmem:[%s3 + $0x10] sm:$0xff]
    %v109 = vld [vmem:[%s3 + $0x18] sm:$0xff]
    %v110 = vld [vmem:[%s4] sm:$0x1]
    %v112 = vlaneseq
    %v113 = vshrl.u32 %v112, 7
    %v114 = vsub.s32 0, %v113
    %v115 = vrot.slane %v110, %v114
    %vm117 = vcmask 261120
    %v119 = vsel %vm117, %v105, 0
    %121 = vmatprep.subr.mxu0 0.0
    %122 = vmatpush1.msra.mxu0 0.0
    %123 = vmatprep.subr.mxu0 0.0
    %124 = vmatpush1.msra.mxu0 0.0
    %125 = vmatprep.subr.mxu0 0.0
    %126 = vmatpush1.msra.mxu0 0.0
    %127 = vmatprep.subr.mxu0 0.0
    %128 = vmatpush1.msra.mxu0 0.0
    %129 = vmatprep.subr.mxu0 0.0
    %130 = vmatpush1.msra.mxu0 0.0
    %131 = vmatprep.subr.mxu0 0.0
    %132 = vmatpush1.msra.mxu0 0.0
    %133 = vmatprep.subr.mxu0 0.0
    %134 = vmatpush1.msra.mxu0 0.0
    %135 = vmatprep.subr.mxu0 0.0
    %136 = vmatpush1.msra.mxu0 0.0
    %137 = vmatprep.subr.mxu0 0.0
    %138 = vmatpush1.msra.mxu0 0.0
    %139 = vmatprep.subr.mxu0 0.0
    %140 = vmatpush1.msra.mxu0 0.0
    %141 = vmatprep.subr.mxu0 0.0
    %142 = vmatpush1.msra.mxu0 0.0
    %143 = vmatprep.subr.mxu0 0.0
    %144 = vmatpush1.msra.mxu0 0.0
    %145 = vmatprep.subr.mxu0 0.0
    %146 = vmatpush1.msra.mxu0 %v109
    %147 = vmatprep.subr.mxu0 0.0
    %148 = vmatpush1.msra.mxu0 %v108
    %149 = vmatprep.subr.mxu0 0.0
    %150 = vmatpush1.msra.mxu0 %v107
    %151 = vmatprep.subr.mxu0 0.0
    %152 = vmatpush1.msra.mxu0 %v106
    %153 = vmatprep.subr.mxu0 0.0
    %154 = vmatpush2.msra.mxu0 0.0
    %155 = vmatprep.subr.mxu0 0.0
    %156 = vmatpush2.msra.mxu0 0.0
    %157 = vmatprep.subr.mxu0 0.0
    %158 = vmatpush2.msra.mxu0 0.0
    %159 = vmatprep.subr.mxu0 0.0
    %160 = vmatpush2.msra.mxu0 0.0
    %161 = vmatprep.subr.mxu0 0.0
    %162 = vmatpush2.msra.mxu0 0.0
    %163 = vmatprep.subr.mxu0 0.0
    %164 = vmatpush2.msra.mxu0 0.0
    %165 = vmatprep.subr.mxu0 0.0
    %166 = vmatpush2.msra.mxu0 0.0
    %167 = vmatprep.subr.mxu0 0.0
    %168 = vmatpush2.msra.mxu0 0.0
    %169 = vmatprep.subr.mxu0 0.0
    %170 = vmatpush2.msra.mxu0 0.0
    %171 = vmatprep.subr.mxu0 0.0
    %172 = vmatpush2.msra.mxu0 0.0
    %173 = vmatprep.subr.mxu0 0.0
    %174 = vmatpush2.msra.mxu0 0.0
    %175 = vmatprep.subr.mxu0 0.0
    %176 = vmatpush2.msra.mxu0 0.0
    %177 = vmatprep.subr.mxu0 0.0
    %178 = vmatpush2.msra.mxu0 0.0
    %179 = vmatprep.subr.mxu0 0.0
    %180 = vmatpush2.msra.mxu0 0.0
    %181 = vmatprep.subr.mxu0 0.0
    %182 = vmatpush2.msra.mxu0 0.0
    %183 = vmatprep.subr.mxu0 0.0
    %184 = vmatpush2.msra.mxu0 0.0
    %185 = vmatprep.mubr.f32.mxu0 0.0
    %186 = vmatmul.mubr.f32.gmra.mxu0 %v119
    %v187 = vpop.f32.mrf.mxu0
    %v188 = vadd.f32 %v115, %v187
    %v189 = vpop.f32.mrf.mxu0
    %190 = vdwg.mxu0
    %v191 = vmax.f32 %v188, -2.0
    %v192 = vmin.f32 %v191, 2.0
    %v193 = vmul.f32 %v192, 1.442695
    %v194 = vpow.pop %v193
    %v195 = vlaneseq
    %v196 = vand.u32 %v195, 127
    %vm197 = vcmp.lt.s32.totalorder %v196, 4
    %v198 = vsel %vm197, %v188, %v194
    %vm199 = vcmask 64512
    %200 = vst.msk [vmem:[#allocation2] sm:$0xff] %vm199, %v198
    // Predicated region
    $region22: #{tpu_custom_call.1} parent=1 // pred_check
      _
    $region23: #{tpu_custom_call.1} parent=1 // pred_check_branch
      %202 = sbr.rel (0) target = $region25
    $region24: #{tpu_custom_call.1} parent=1 // pred_region
      %s204 = ssub.s32 128, 128
      %205 = vsyncadd [#allocation3], %s204
      %s207 = sshll.u32 [#allocation2], 4
      %s208 = int_to_ptr.vmem [resolvable:$true] %s207
      %210 = dma.vmem_to_hbm [thread:$0]  %s208, 128, %s5, [#allocation3]
    $region25: #{tpu_custom_call.1} parent=1 // pred_fallthru
      _
    // Predicated region
    $region26: #{tpu_custom_call.1} parent=1 // pred_check
      _
    $region27: #{tpu_custom_call.1} parent=1 // pred_check_branch
      %212 = sbr.rel (0) target = $region29
    $region28: #{tpu_custom_call.1} parent=1 // pred_region
      %213 = dma.done [#allocation3], 128
    $region29: #{tpu_custom_call.1} parent=1 // pred_fallthru
      _
    %214 = vsyncpa [#allocation3], 1

</llo_original>
